<compile_context>
chip_gen: v7x
topology: tpu7x:2x2x1
jax: 0.10.0
libtpu: 0.0.40
codegen_flags: <defaults>
</compile_context>

<pallas_src>
import functools

import jax
import jax.numpy as jnp
from jax import lax
from jax.experimental import pallas as pl
from jax.experimental.pallas import tpu as pltpu


def _sp_dotatt_kernel(x_ref, wp_ref, bp_ref, wqkv_ref, bqkv_ref, out_ref, *,
                      bb, cin, ll, hw, rstride, precise):
    """One grid step == `bb` batch elements.

    x_ref    : (bb, cin, ll, hw)   native-layout feats (hw = h*w), f32
    wp_ref   : (cin*hw, cin)       CVT3D_2D_SP projection weight (x @ wp)
    bp_ref   : (1, cin)
    wqkv_ref : (3*rstride, cin)    fused q|k|v weights, channel-major, each
                                   block padded to a sublane-aligned stride
    bqkv_ref : (3*rstride, 1)
    out_ref  : (bb, cin, ll)       feat_e, already in (c, l) layout
    """
    c = cin
    nrows = bb * ll
    mxu_dtype = jnp.float32 if precise else jnp.bfloat16

    def mm(a, b, contract=None):
        # Cast operands only at the MXU boundary (VPU/EUP math stays f32,
        # which matters on v5e where those units have no bf16 path).
        a = a.astype(mxu_dtype)
        b = b.astype(mxu_dtype)
        if contract is None:
            return jnp.dot(a, b, preferred_element_type=jnp.float32)
        return lax.dot_general(a, b, dimension_numbers=(contract, ((), ())),
                               preferred_element_type=jnp.float32)

    x = x_ref[...]                                    # (bb, cin, ll, hw) f32

    # ---- CVT3D_2D_SP projection -> feats_1D; rows = (batch, band), cols = C.
    # Contract (c, h*w) channel-by-channel so the input needs no transpose.
    f1 = jnp.broadcast_to(bp_ref[...], (nrows, c)).astype(jnp.float32)
    for ci in range(cin):
        xi = x[:, ci, :, :].reshape(nrows, hw)        # (bb*ll, hw)
        wi = wp_ref[ci * hw:(ci + 1) * hw, :]         # (hw, c)
        f1 = f1 + mm(xi, wi)

    # ---- fused q/k/v projection in ONE matmul, produced channel-major:
    # qkv_t[m, r] = sum_c wqkv[m, c] * f1[r, c]   -> (3*rstride, bb*ll)
    qkv_t = mm(wqkv_ref[...], f1, ((1,), (1,))) + bqkv_ref[...]

    # ---- per-batch dot-product attention over the spectral (l) axis.
    for bi in range(bb):
        cols = slice(bi * ll, (bi + 1) * ll)
        q = qkv_t[0 * rstride:0 * rstride + c, cols]  # (C, L)
        k = qkv_t[1 * rstride:1 * rstride + c, cols]  # (C, L)
        v = qkv_t[2 * rstride:2 * rstride + c, cols]  # (C, L)

        # scores[i, j] = sum_c q[c, i] * k[c, j]      (== torch.bmm(q^T, k))
        s = mm(q, k, ((0,), (0,)))                    # (L, L)
        s = s - jnp.max(s, axis=-1, keepdims=True)    # stable softmax (f32)
        e = jnp.exp(s)
        attn = e * pl.reciprocal(jnp.sum(e, axis=-1, keepdims=True),
                                 approx=not precise)

        # feat_e[c, i] = sum_j v[c, j] * attn[i, j]   (== torch.bmm(v, attn^T))
        # Already (C, L): no output transpose needed anywhere.
        out_ref[bi] = mm(v, attn, ((1,), (1,))).astype(out_ref.dtype)


def sp_dotatt(feats, params, *, precise=False):
    """feats: (b, c, l, h, w) f32 -> feat_e: (b, c, l) f32.

    precise=True : f32 MXU operands + exact reciprocal (reference-accurate).
    precise=False: bf16 MXU operands with f32 accumulation + approx reciprocal
                   (fast path for v6e/v7x; softmax stays in f32).
    """
    b, c, l, h, w = feats.shape
    hw = h * w
    K = c * hw

    # Free contiguous dim-merge (no HBM roundtrip, unlike a transpose).
    x4 = feats.reshape(b, c, l, hw)

    # Grid: at most 2 parallel steps (one per v7x TensorCore); each step
    # processes half of the batch so per-step overhead (~0.35us) is constant
    # and the projection matmul sees bb*l rows at once.
    if b % 2 == 0:
        nb, bb = 2, b // 2
    else:
        nb, bb = b, 1

    wp, bp = params["wp"], params["bp"]
    wqkv_t, bqkv_t = params["wqkv_t"], params["bqkv_t"]

    # Pad each of the q/k/v row blocks of the fused weight to a sublane-aligned
    # stride so all in-kernel slices start on 8-row boundaries (f32 sublanes).
    rstride = ((c + 7) // 8) * 8
    if rstride == c:
        wqkv_p, bqkv_p = wqkv_t, bqkv_t
    else:
        pad = rstride - c

        def _pad_blocks(a):
            blocks = [a[i * c:(i + 1) * c] for i in range(3)]
            zpad = jnp.zeros((pad,) + a.shape[1:], a.dtype)
            return jnp.concatenate(
                [jnp.concatenate([blk, zpad], axis=0) for blk in blocks], axis=0)

        wqkv_p = _pad_blocks(wqkv_t)          # (3*rstride, c)
        bqkv_p = _pad_blocks(bqkv_t)          # (3*rstride, 1)

    kernel = functools.partial(_sp_dotatt_kernel, bb=bb, cin=c, ll=l, hw=hw,
                               rstride=rstride, precise=precise)

    flops = 2 * b * l * (K * c + 3 * c * c + 2 * l * c)
    bytes_accessed = 4 * (b * c * l * hw + K * c + c + 3 * c * c + 3 * c
                          + b * c * l)
    cost = pl.CostEstimate(flops=flops, transcendentals=b * l * l,
                           bytes_accessed=bytes_accessed)

    # NOTE: the narrow (K, c) weight is lane-padded to 128 in VMEM (~512 KiB
    # for K=1024) -- harmless here; its constant index_map means it is DMA'd
    # once, not per grid step.
    # TODO(synk): for production-scale K (= c*h*w in the MB range) tile K as a
    # reduction grid axis with a VMEM accumulator to stay under v7x's 64 MiB.
    return pl.pallas_call(
        kernel,
        out_shape=jax.ShapeDtypeStruct((b, c, l), jnp.float32),
        grid_spec=pltpu.PrefetchScalarGridSpec(
            num_scalar_prefetch=0,
            grid=(nb,),
            in_specs=[
                pl.BlockSpec((bb, c, l, hw), lambda i: (i, 0, 0, 0)),  # feats
                pl.BlockSpec((K, c), lambda i: (0, 0)),                # wp
                pl.BlockSpec((1, c), lambda i: (0, 0)),                # bp
                pl.BlockSpec((3 * rstride, c), lambda i: (0, 0)),      # wqkv_t
                pl.BlockSpec((3 * rstride, 1), lambda i: (0, 0)),      # bqkv_t
            ],
            out_specs=pl.BlockSpec((bb, c, l), lambda i: (i, 0, 0)),
        ),
        compiler_params=pltpu.CompilerParams(
            dimension_semantics=("parallel",)),
        cost_estimate=cost,
    )(x4, wp, bp, wqkv_p, bqkv_p)


def _reference(feats, params):
    """Pure-JAX f32 reference mirroring the PyTorch forward."""
    b, c, l, h, w = feats.shape
    hp = jax.lax.Precision.HIGHEST
    x_flat = jnp.transpose(feats, (0, 2, 1, 3, 4)).reshape(b, l, c * h * w)
    f1 = jnp.einsum("blk,kc->blc", x_flat, params["wp"], precision=hp)
    f1 = f1 + params["bp"]                                      # (b, l, C)
    qkv = jnp.einsum("blc,mc->blm", f1, params["wqkv_t"], precision=hp)
    qkv = qkv + params["bqkv_t"][:, 0]                          # (b, l, 3C)
    q, k, v = qkv[..., :c], qkv[..., c:2 * c], qkv[..., 2 * c:]
    scores = jnp.einsum("bic,bjc->bij", q, k, precision=hp)
    attn = jax.nn.softmax(scores, axis=-1)
    feat_e = jnp.einsum("bij,bjc->bic", attn, v, precision=hp)  # (b, l, C)
    return jnp.transpose(feat_e, (0, 2, 1))                     # (b, c, l)


def make_params(key, feat_num, h, w):
    K = feat_num * h * w
    ks = jax.random.split(key, 4)
    scale_p = 1.0 / jnp.sqrt(jnp.float32(K))
    scale_c = 1.0 / jnp.sqrt(jnp.float32(feat_num))
    return {
        # CVT3D_2D_SP (Conv3d kernel (1,h,w)) weight, pre-transposed to (K, C);
        # feature order along K is (c, h, w).
        "wp": jax.random.normal(ks[0], (K, feat_num), jnp.float32) * scale_p,
        "bp": jax.random.normal(ks[1], (1, feat_num), jnp.float32) * scale_p,
        # Fused q|k|v 1x1-conv weights, channel-major:
        # rows [0:C)=q, [C:2C)=k, [2C:3C)=v; qkv^T = W @ feats_1D^T + b.
        "wqkv_t": jax.random.normal(ks[2], (3 * feat_num, feat_num),
                                    jnp.float32) * scale_c,
        "bqkv_t": jax.random.normal(ks[3], (3 * feat_num, 1),
                                    jnp.float32) * scale_c,
        # alpha exists in the module but does not affect the returned feat_e.
        "alpha": jnp.zeros((1,), jnp.float32),
    }


if __name__ == "__main__":
    # Small shapes consistent with the module: (b, c, l, h, w)
    b, feat_num, l, h, w = 2, 4, 8, 16, 16

    key = jax.random.PRNGKey(0)
    k_x, k_p = jax.random.split(key)
    feats = jax.random.normal(k_x, (b, feat_num, l, h, w), jnp.float32)
    params = make_params(k_p, feat_num, h, w)

    ref = _reference(feats, params)

    # Exact path: f32 MXU operands, exact reciprocal.
    out = jax.block_until_ready(sp_dotatt(feats, params, precise=True))
    assert out.shape == (b, feat_num, l), out.shape
    assert jnp.allclose(out, ref, atol=1e-4, rtol=1e-4), "precise path mismatch"

    # Fast path (bf16 MXU inputs, f32 accumulation, approx reciprocal).
    out_fast = jax.block_until_ready(sp_dotatt(feats, params, precise=False))
    assert out_fast.shape == (b, feat_num, l), out_fast.shape
    assert jnp.allclose(out_fast, ref, atol=1e-1, rtol=1e-1), "fast path mismatch"

    print("KERNEL_OK")
</pallas_src>

<mosaic_0001>
module attributes {stable_mosaic.version = 11 : i64} {
  func.func @_sp_dotatt_kernel(%arg0: i32, %arg1: memref<1x4x8x256xf32, #tpu.memory_space<vmem>>, %arg2: memref<1024x4xf32, #tpu.memory_space<vmem>>, %arg3: memref<1x4xf32, #tpu.memory_space<vmem>>, %arg4: memref<24x4xf32, #tpu.memory_space<vmem>>, %arg5: memref<24x1xf32, #tpu.memory_space<vmem>>, %arg6: memref<1x4x8xf32, #tpu.memory_space<vmem>>) attributes {dimension_semantics = [#tpu.dimension_semantics<parallel>], iteration_bounds = array<i64: 2>, scalar_prefetch = 0 : i64, scratch_operands = 0 : i64, tpu.core_type = #tpu.core_type<tc>, window_params = [{transform_indices = @transform_0, window_bounds = array<i64: 1, 4, 8, 256>}, {pipeline_mode = #tpu.pipeline_mode<synchronous>, transform_indices = @transform_1, window_bounds = array<i64: 1024, 4>}, {pipeline_mode = #tpu.pipeline_mode<synchronous>, transform_indices = @transform_2, window_bounds = array<i64: 1, 4>}, {pipeline_mode = #tpu.pipeline_mode<synchronous>, transform_indices = @transform_3, window_bounds = array<i64: 24, 4>}, {pipeline_mode = #tpu.pipeline_mode<synchronous>, transform_indices = @transform_4, window_bounds = array<i64: 24, 1>}, {transform_indices = @transform_5, window_bounds = array<i64: 1, 4, 8>}]} {
    %c0 = arith.constant 0 : index
    %c0_0 = arith.constant 0 : index
    %c0_1 = arith.constant 0 : index
    %c0_2 = arith.constant 0 : index
    %0 = vector.load %arg1[%c0, %c0_0, %c0_1, %c0_2] : memref<1x4x8x256xf32, #tpu.memory_space<vmem>>, vector<1x4x8x256xf32>
    %c0_3 = arith.constant 0 : index
    %c0_4 = arith.constant 0 : index
    %1 = vector.load %arg3[%c0_3, %c0_4] : memref<1x4xf32, #tpu.memory_space<vmem>>, vector<1x4xf32>
    %2 = vector.shape_cast %1 : vector<1x4xf32> to vector<1x4xf32>
    %3 = vector.broadcast %2 : vector<1x4xf32> to vector<8x4xf32>
    %4 = vector.extract_strided_slice %0 {offsets = [0, 0, 0, 0], sizes = [1, 1, 8, 256], strides = [1, 1, 1, 1]} : vector<1x4x8x256xf32> to vector<1x1x8x256xf32>
    %5 = vector.shape_cast %4 : vector<1x1x8x256xf32> to vector<1x8x256xf32>
    %6 = vector.shape_cast %5 : vector<1x8x256xf32> to vector<8x256xf32>
    %c0_5 = arith.constant 0 : index
    %c0_6 = arith.constant 0 : index
    %7 = vector.load %arg2[%c0_5, %c0_6] : memref<1024x4xf32, #tpu.memory_space<vmem>>, vector<256x4xf32>
    %cst = arith.constant dense<0.000000e+00> : vector<8x4xf32>
    %8 = tpu.matmul %6, %7, %cst {dimension_numbers = #tpu.dot_dimension_numbers<[1], [0], [0], [1], [0, 0, 1, 1], [], []>} : vector<8x256xf32>, vector<256x4xf32>, vector<8x4xf32> -> vector<8x4xf32>
    %9 = arith.addf %3, %8 : vector<8x4xf32>
    %10 = vector.extract_strided_slice %0 {offsets = [0, 1, 0, 0], sizes = [1, 1, 8, 256], strides = [1, 1, 1, 1]} : vector<1x4x8x256xf32> to vector<1x1x8x256xf32>
    %11 = vector.shape_cast %10 : vector<1x1x8x256xf32> to vector<1x8x256xf32>
    %12 = vector.shape_cast %11 : vector<1x8x256xf32> to vector<8x256xf32>
    %c256 = arith.constant 256 : index
    %c0_7 = arith.constant 0 : index
    %13 = vector.load %arg2[%c256, %c0_7] : memref<1024x4xf32, #tpu.memory_space<vmem>>, vector<256x4xf32>
    %cst_8 = arith.constant dense<0.000000e+00> : vector<8x4xf32>
    %14 = tpu.matmul %12, %13, %cst_8 {dimension_numbers = #tpu.dot_dimension_numbers<[1], [0], [0], [1], [0, 0, 1, 1], [], []>} : vector<8x256xf32>, vector<256x4xf32>, vector<8x4xf32> -> vector<8x4xf32>
    %15 = arith.addf %9, %14 : vector<8x4xf32>
    %16 = vector.extract_strided_slice %0 {offsets = [0, 2, 0, 0], sizes = [1, 1, 8, 256], strides = [1, 1, 1, 1]} : vector<1x4x8x256xf32> to vector<1x1x8x256xf32>
    %17 = vector.shape_cast %16 : vector<1x1x8x256xf32> to vector<1x8x256xf32>
    %18 = vector.shape_cast %17 : vector<1x8x256xf32> to vector<8x256xf32>
    %c512 = arith.constant 512 : index
    %c0_9 = arith.constant 0 : index
    %19 = vector.load %arg2[%c512, %c0_9] : memref<1024x4xf32, #tpu.memory_space<vmem>>, vector<256x4xf32>
    %cst_10 = arith.constant dense<0.000000e+00> : vector<8x4xf32>
    %20 = tpu.matmul %18, %19, %cst_10 {dimension_numbers = #tpu.dot_dimension_numbers<[1], [0], [0], [1], [0, 0, 1, 1], [], []>} : vector<8x256xf32>, vector<256x4xf32>, vector<8x4xf32> -> vector<8x4xf32>
    %21 = arith.addf %15, %20 : vector<8x4xf32>
    %22 = vector.extract_strided_slice %0 {offsets = [0, 3, 0, 0], sizes = [1, 1, 8, 256], strides = [1, 1, 1, 1]} : vector<1x4x8x256xf32> to vector<1x1x8x256xf32>
    %23 = vector.shape_cast %22 : vector<1x1x8x256xf32> to vector<1x8x256xf32>
    %24 = vector.shape_cast %23 : vector<1x8x256xf32> to vector<8x256xf32>
    %c768 = arith.constant 768 : index
    %c0_11 = arith.constant 0 : index
    %25 = vector.load %arg2[%c768, %c0_11] : memref<1024x4xf32, #tpu.memory_space<vmem>>, vector<256x4xf32>
    %cst_12 = arith.constant dense<0.000000e+00> : vector<8x4xf32>
    %26 = tpu.matmul %24, %25, %cst_12 {dimension_numbers = #tpu.dot_dimension_numbers<[1], [0], [0], [1], [0, 0, 1, 1], [], []>} : vector<8x256xf32>, vector<256x4xf32>, vector<8x4xf32> -> vector<8x4xf32>
    %27 = arith.addf %21, %26 : vector<8x4xf32>
    %c0_13 = arith.constant 0 : index
    %c0_14 = arith.constant 0 : index
    %28 = vector.load %arg4[%c0_13, %c0_14] : memref<24x4xf32, #tpu.memory_space<vmem>>, vector<24x4xf32>
    %cst_15 = arith.constant dense<0.000000e+00> : vector<24x8xf32>
    %29 = tpu.matmul %28, %27, %cst_15 {dimension_numbers = #tpu.dot_dimension_numbers<[1], [1], [0], [0], [0, 0, 1, 0], [], []>} : vector<24x4xf32>, vector<8x4xf32>, vector<24x8xf32> -> vector<24x8xf32>
    %c0_16 = arith.constant 0 : index
    %c0_17 = arith.constant 0 : index
    %30 = vector.load %arg5[%c0_16, %c0_17] : memref<24x1xf32, #tpu.memory_space<vmem>>, vector<24x1xf32>
    %31 = vector.broadcast %30 : vector<24x1xf32> to vector<24x8xf32>
    %32 = arith.addf %29, %31 : vector<24x8xf32>
    %33 = vector.extract_strided_slice %32 {offsets = [0, 0], sizes = [4, 8], strides = [1, 1]} : vector<24x8xf32> to vector<4x8xf32>
    %34 = vector.extract_strided_slice %32 {offsets = [8, 0], sizes = [4, 8], strides = [1, 1]} : vector<24x8xf32> to vector<4x8xf32>
    %35 = vector.extract_strided_slice %32 {offsets = [16, 0], sizes = [4, 8], strides = [1, 1]} : vector<24x8xf32> to vector<4x8xf32>
    %cst_18 = arith.constant dense<0.000000e+00> : vector<8x8xf32>
    %36 = tpu.matmul %33, %34, %cst_18 {dimension_numbers = #tpu.dot_dimension_numbers<[0], [0], [1], [1], [0, 1, 1, 1], [], []>} : vector<4x8xf32>, vector<4x8xf32>, vector<8x8xf32> -> vector<8x8xf32>
    %cst_19 = arith.constant dense<0xFF800000> : vector<8xf32>
    %37 = vector.multi_reduction <maximumf>, %36, %cst_19 [1] : vector<8x8xf32> to vector<8xf32>
    %38 = vector.shape_cast %37 : vector<8xf32> to vector<8x1xf32>
    %39 = vector.broadcast %38 : vector<8x1xf32> to vector<8x8xf32>
    %40 = arith.subf %36, %39 : vector<8x8xf32>
    %41 = math.exp %40 : vector<8x8xf32>
    %cst_20 = arith.constant dense<0.000000e+00> : vector<8xf32>
    %42 = vector.multi_reduction <add>, %41, %cst_20 [1] : vector<8x8xf32> to vector<8xf32>
    %43 = vector.shape_cast %42 : vector<8xf32> to vector<8x1xf32>
    %44 = tpu.reciprocal %43 : vector<8x1xf32> -> vector<8x1xf32>
    %45 = vector.broadcast %44 : vector<8x1xf32> to vector<8x8xf32>
    %46 = arith.mulf %41, %45 : vector<8x8xf32>
    %cst_21 = arith.constant dense<0.000000e+00> : vector<4x8xf32>
    %47 = tpu.matmul %35, %46, %cst_21 {dimension_numbers = #tpu.dot_dimension_numbers<[1], [1], [0], [0], [0, 0, 1, 0], [], []>} : vector<4x8xf32>, vector<8x8xf32>, vector<4x8xf32> -> vector<4x8xf32>
    %c0_22 = arith.constant 0 : index
    %c0_23 = arith.constant 0 : index
    %c0_24 = arith.constant 0 : index
    %48 = vector.load %arg6[%c0_22, %c0_23, %c0_24] : memref<1x4x8xf32, #tpu.memory_space<vmem>>, vector<1x4x8xf32>
    %49 = vector.shape_cast %48 : vector<1x4x8xf32> to vector<4x8xf32>
    %50 = vector.shape_cast %47 : vector<4x8xf32> to vector<1x4x8xf32>
    tpu.vector_store %arg6[%c0_22, %c0_23, %c0_24], %50 {strides = array<i32>} : memref<1x4x8xf32, #tpu.memory_space<vmem>>, vector<1x4x8xf32>,
    return
  }
  func.func @transform_0(%arg0: i32) -> (i32, i32, i32, i32) {
    %c0_i32 = arith.constant 0 : i32
    %c0_i32_0 = arith.constant 0 : i32
    %c0_i32_1 = arith.constant 0 : i32
    %c0_i32_2 = arith.constant 0 : i32
    return %arg0, %c0_i32, %c0_i32_0, %c0_i32_1 : i32, i32, i32, i32
  }
  func.func @transform_1(%arg0: i32) -> (i32, i32) {
    %c0_i32 = arith.constant 0 : i32
    %c0_i32_0 = arith.constant 0 : i32
    %c0_i32_1 = arith.constant 0 : i32
    return %c0_i32, %c0_i32_0 : i32, i32
  }
  func.func @transform_2(%arg0: i32) -> (i32, i32) {
    %c0_i32 = arith.constant 0 : i32
    %c0_i32_0 = arith.constant 0 : i32
    %c0_i32_1 = arith.constant 0 : i32
    return %c0_i32, %c0_i32_0 : i32, i32
  }
  func.func @transform_3(%arg0: i32) -> (i32, i32) {
    %c0_i32 = arith.constant 0 : i32
    %c0_i32_0 = arith.constant 0 : i32
    %c0_i32_1 = arith.constant 0 : i32
    return %c0_i32, %c0_i32_0 : i32, i32
  }
  func.func @transform_4(%arg0: i32) -> (i32, i32) {
    %c0_i32 = arith.constant 0 : i32
    %c0_i32_0 = arith.constant 0 : i32
    %c0_i32_1 = arith.constant 0 : i32
    return %c0_i32, %c0_i32_0 : i32, i32
  }
  func.func @transform_5(%arg0: i32) -> (i32, i32, i32) {
    %c0_i32 = arith.constant 0 : i32
    %c0_i32_0 = arith.constant 0 : i32
    %c0_i32_1 = arith.constant 0 : i32
    return %arg0, %c0_i32, %c0_i32_0 : i32, i32, i32
  }
}

</mosaic_0001>

<llo_original>
// kernel: tpu_custom_call.1
$region0: #{tpu_custom_call.1}
  #allocation0 [shape = 'u32[]', space=smem, size = 0x4, offset = 0x4, fixed_abs, tag = 'smem constant byte address 0x4 - core index']
  #allocation1 [shape = 'u32[144,128]{1,0:T(1,128)}', space=vmem, size = 0x12000, scoped, tag = 'internal scratch']
  %s0 = inlined_call_operand.vmem [shape: f32[2,4,8,256], index: 0, kind: input, shape index: {}]
  %s1 = inlined_call_operand.vmem [shape: f32[1024,4], index: 1, kind: input, shape index: {}]
  %s2 = inlined_call_operand.vmem [shape: f32[1,4], index: 2, kind: input, shape index: {}]
  %s3 = inlined_call_operand.vmem [shape: f32[24,4], index: 3, kind: input, shape index: {}]
  %s4 = inlined_call_operand.vmem [shape: f32[24,1], index: 4, kind: input, shape index: {}]
  %s5 = inlined_call_operand.hbm [shape: f32[2,4,8], index: 5, kind: output, shape index: {}]
  %s6 = sld [smem:[#allocation0]]
  $region53: #{tpu_custom_call.1} parent=0
    _
  %s8 = ssub.s32 1, %s6
  %s9 = scalar_select 0, %s8, %s6
  $region1: #{tpu_custom_call.1} parent=0
    #allocation2 [shape = 'u8[4096]{0}', space=vmem, size = 0x1000, scoped, tag = 'output window, operand 0']
    #allocation3 [shape = 's32[2]{0}', space=sflag, size = 0x8, scoped, tag = 'scoped memory for tpu_custom_call.1']
    %10 = vsyncpa [#allocation3], 0
    %s11 = scalar_lea.sflag [#allocation3], 1
    %12 = vsyncpa %s11, 0
    loop: start=0, step=1, limit=4
    $region2: #{tpu_custom_call.1} parent=1 // loop_pre_header
      _
    $region3: #{tpu_custom_call.1} parent=1 // loop_header
      %s14 = sphi 0, %s18
      %p15 = scmp.ge.s32.totalorder %s14, 4
      %s24 = sphi 0, %s26
      %s27 = sphi 0, %s24
      %s28 = sphi 0, %s27
      %s44 = sphi 0, %s28
      %s48 = sphi 0, %s48
      %s50 = sphi 0, %s48
      %s51 = sphi 0, %s50
      %s65 = sphi 0, %s51
      %s69 = sphi 0, %s69
      %s71 = sphi 0, %s69
      %s72 = sphi 0, %s71
      %s86 = sphi 0, %s72
      %s90 = sphi 0, %s90
      %s92 = sphi 0, %s90
      %s93 = sphi 0, %s92
      %s107 = sphi 0, %s93
      %s111 = sphi 0, %s111
      %s113 = sphi 0, %s111
      %s114 = sphi 0, %s113
      %s128 = sphi 0, %s114
      %s134 = sphi 0, %s136
      %s137 = sphi 0, %s134
      %s138 = sphi 0, %s137
      %s154 = sphi 0, %s138
    $region4: #{tpu_custom_call.1} parent=1 // loop_header_branch
      %17 = sbr.rel (%p15) target = $region8
    $region5: #{tpu_custom_call.1} parent=1 // loop_body
      %s19 = ssub.s32 %s14, 1
      %s20 = ssub.s32 %s14, 2
      %s21 = sadd.s32 %s14, 1
      %s22 = ssub.s32 %s14, %s21
      %p23 = scmp.eq.s32.totalorder %s22, 0
      %s25 = sadd.s32 %s24, 1
      %s26 = scalar_select %p23, %s24, %s25
      %p29 = pneg %p23
      %p30 = scmp.eq.s32.totalorder %s14, 1
      %p31 = por %p29, %p30
      %p32 = scmp.ne.s32.totalorder %s24, %s27
      %p33 = scmp.eq.s32.totalorder %s14, 0
      %p34 = por %p32, %p33
      %p35 = scmp.ne.s32.totalorder %s24, %s27
      %p36 = scmp.eq.s32.totalorder %s19, 1
      %p37 = por %p35, %p36
      %p38 = scmp.ne.s32.totalorder %s27, %s28
      %p39 = scmp.eq.s32.totalorder %s19, 0
      %p40 = por %p38, %p39
      %p41 = scmp.ne.s32.totalorder %s27, %s28
      %p42 = scmp.eq.s32.totalorder %s20, 1
      %p43 = por %p41, %p42
      %p45 = scmp.ne.s32.totalorder %s28, %s44
      %p46 = scmp.eq.s32.totalorder %s20, 0
      %p47 = por %p45, %p46
      %s49 = sadd.s32 %s48, 1
      %p52 = scmp.eq.s32.totalorder %s14, 1
      %p53 = scmp.ne.s32.totalorder %s48, %s50
      %p54 = scmp.eq.s32.totalorder %s14, 0
      %p55 = por %p53, %p54
      %p56 = scmp.ne.s32.totalorder %s48, %s50
      %p57 = scmp.eq.s32.totalorder %s19, 1
      %p58 = por %p56, %p57
      %p59 = scmp.ne.s32.totalorder %s50, %s51
      %p60 = scmp.eq.s32.totalorder %s19, 0
      %p61 = por %p59, %p60
      %p62 = scmp.ne.s32.totalorder %s50, %s51
      %p63 = scmp.eq.s32.totalorder %s20, 1
      %p64 = por %p62, %p63
      %p66 = scmp.ne.s32.totalorder %s51, %s65
      %p67 = scmp.eq.s32.totalorder %s20, 0
      %p68 = por %p66, %p67
      %s70 = sadd.s32 %s69, 1
      %p73 = scmp.eq.s32.totalorder %s14, 1
      %p74 = scmp.ne.s32.totalorder %s69, %s71
      %p75 = scmp.eq.s32.totalorder %s14, 0
      %p76 = por %p74, %p75
      %p77 = scmp.ne.s32.totalorder %s69, %s71
      %p78 = scmp.eq.s32.totalorder %s19, 1
      %p79 = por %p77, %p78
      %p80 = scmp.ne.s32.totalorder %s71, %s72
      %p81 = scmp.eq.s32.totalorder %s19, 0
      %p82 = por %p80, %p81
      %p83 = scmp.ne.s32.totalorder %s71, %s72
      %p84 = scmp.eq.s32.totalorder %s20, 1
      %p85 = por %p83, %p84
      %p87 = scmp.ne.s32.totalorder %s72, %s86
      %p88 = scmp.eq.s32.totalorder %s20, 0
      %p89 = por %p87, %p88
      %s91 = sadd.s32 %s90, 1
      %p94 = scmp.eq.s32.totalorder %s14, 1
      %p95 = scmp.ne.s32.totalorder %s90, %s92
      %p96 = scmp.eq.s32.totalorder %s14, 0
      %p97 = por %p95, %p96
      %p98 = scmp.ne.s32.totalorder %s90, %s92
      %p99 = scmp.eq.s32.totalorder %s19, 1
      %p100 = por %p98, %p99
      %p101 = scmp.ne.s32.totalorder %s92, %s93
      %p102 = scmp.eq.s32.totalorder %s19, 0
      %p103 = por %p101, %p102
      %p104 = scmp.ne.s32.totalorder %s92, %s93
      %p105 = scmp.eq.s32.totalorder %s20, 1
      %p106 = por %p104, %p105
      %p108 = scmp.ne.s32.totalorder %s93, %s107
      %p109 = scmp.eq.s32.totalorder %s20, 0
      %p110 = por %p108, %p109
      %s112 = sadd.s32 %s111, 1
      %p115 = scmp.eq.s32.totalorder %s14, 1
      %p116 = scmp.ne.s32.totalorder %s111, %s113
      %p117 = scmp.eq.s32.totalorder %s14, 0
      %p118 = por %p116, %p117
      %p119 = scmp.ne.s32.totalorder %s111, %s113
      %p120 = scmp.eq.s32.totalorder %s19, 1
      %p121 = por %p119, %p120
      %p122 = scmp.ne.s32.totalorder %s113, %s114
      %p123 = scmp.eq.s32.totalorder %s19, 0
      %p124 = por %p122, %p123
      %p125 = scmp.ne.s32.totalorder %s113, %s114
      %p126 = scmp.eq.s32.totalorder %s20, 1
      %p127 = por %p125, %p126
      %p129 = scmp.ne.s32.totalorder %s114, %s128
      %p130 = scmp.eq.s32.totalorder %s20, 0
      %p131 = por %p129, %p130
      %s132 = ssub.s32 %s14, %s21
      %p133 = scmp.eq.s32.totalorder %s132, 0
      %s135 = sadd.s32 %s134, 1
      %s136 = scalar_select %p133, %s134, %s135
      %p139 = pneg %p133
      %p140 = scmp.eq.s32.totalorder %s14, 1
      %p141 = por %p139, %p140
      %p142 = scmp.ne.s32.totalorder %s134, %s137
      %p143 = scmp.eq.s32.totalorder %s14, 0
      %p144 = por %p142, %p143
      %p145 = scmp.ne.s32.totalorder %s134, %s137
      %p146 = scmp.eq.s32.totalorder %s19, 1
      %p147 = por %p145, %p146
      %p148 = scmp.ne.s32.totalorder %s137, %s138
      %p149 = scmp.eq.s32.totalorder %s19, 0
      %p150 = por %p148, %p149
      %p151 = scmp.ne.s32.totalorder %s137, %s138
      %p152 = scmp.eq.s32.totalorder %s20, 1
      %p153 = por %p151, %p152
      %p155 = scmp.ne.s32.totalorder %s138, %s154
      %p156 = scmp.eq.s32.totalorder %s20, 0
      %p157 = por %p155, %p156
      %p158 = scmp.le.s32.totalorder 1, %s14
      %p159 = scmp.lt.s32.totalorder %s14, 3
      %p160 = pnand %p158, %p159
      %p161 = pneg %p160
      // Predicated region
      $region9: #{tpu_custom_call.1} parent=5 // pred_check
        _
      $region10: #{tpu_custom_call.1} parent=5 // pred_check_branch
        %163 = sbr.rel (%p160) target = $region12
      $region11: #{tpu_custom_call.1} parent=5 // pred_region
        %s164 = ssub.s32 %s14, 1
        // Predicated region
        $region13: #{tpu_custom_call.1} parent=11 // pred_check
          %p165 = pneg %p61
        $region14: #{tpu_custom_call.1} parent=11 // pred_check_branch
          %167 = sbr.rel (%p165) target = $region16
        $region15: #{tpu_custom_call.1} parent=11 // pred_region
          _
        $region16: #{tpu_custom_call.1} parent=11 // pred_fallthru
          _
        // Predicated region
        $region17: #{tpu_custom_call.1} parent=11 // pred_check
          %p168 = pneg %p82
        $region18: #{tpu_custom_call.1} parent=11 // pred_check_branch
          %170 = sbr.rel (%p168) target = $region20
        $region19: #{tpu_custom_call.1} parent=11 // pred_region
          _
        $region20: #{tpu_custom_call.1} parent=11 // pred_fallthru
          _
        // Predicated region
        $region21: #{tpu_custom_call.1} parent=11 // pred_check
          %p171 = pneg %p103
        $region22: #{tpu_custom_call.1} parent=11 // pred_check_branch
          %173 = sbr.rel (%p171) target = $region24
        $region23: #{tpu_custom_call.1} parent=11 // pred_region
          _
        $region24: #{tpu_custom_call.1} parent=11 // pred_fallthru
          _
        // Predicated region
        $region25: #{tpu_custom_call.1} parent=11 // pred_check
          %p174 = pneg %p124
        $region26: #{tpu_custom_call.1} parent=11 // pred_check_branch
          %176 = sbr.rel (%p174) target = $region28
        $region27: #{tpu_custom_call.1} parent=11 // pred_region
          _
        $region28: #{tpu_custom_call.1} parent=11 // pred_fallthru
          _
      $region12: #{tpu_custom_call.1} parent=5 // pred_fallthru
        _
      %p177 = scmp.lt.s32.totalorder %s14, 2
      // Predicated region
      $region29: #{tpu_custom_call.1} parent=5 // pred_check
        %p178 = pneg %p177
      $region30: #{tpu_custom_call.1} parent=5 // pred_check_branch
        %180 = sbr.rel (%p178) target = $region32
      $region31: #{tpu_custom_call.1} parent=5 // pred_region
        // Predicated region
        $region33: #{tpu_custom_call.1} parent=31 // pred_check
          %p181 = pneg %p34
        $region34: #{tpu_custom_call.1} parent=31 // pred_check_branch
          %183 = sbr.rel (%p181) target = $region36
        $region35: #{tpu_custom_call.1} parent=31 // pred_region
          %p184 = scmp.lt.s32.totalorder %s14, 1
          %s185 = scalar_select %p184, %s14, 1
          %s186 = smul.addr %s185, 8
          %s187 = smul.addr %s186, 8
          %s188 = scalar_lea.vmem %s0, %s187
        $region36: #{tpu_custom_call.1} parent=31 // pred_fallthru
          _
      $region32: #{tpu_custom_call.1} parent=5 // pred_fallthru
        _
      %p189 = scmp.le.s32.totalorder 1, %s14
      %p190 = scmp.lt.s32.totalorder %s14, 3
      %p191 = pnand %p189, %p190
      %p192 = pneg %p191
      // Predicated region
      $region37: #{tpu_custom_call.1} parent=5 // pred_check
        _
      $region38: #{tpu_custom_call.1} parent=5 // pred_check_branch
        %194 = sbr.rel (%p191) target = $region40
      $region39: #{tpu_custom_call.1} parent=5 // pred_region
        %s195 = ssub.s32 %s14, 1
        %p196 = scmp.lt.s32.totalorder %s19, 1
        %s197 = scalar_select %p196, %s19, 1
        %s198 = smul.addr %s197, 8
        %s199 = smul.addr %s198, 8
        %s200 = scalar_lea.vmem %s0, %s199
        %p201 = pneg %p40
        %p202 = pneg %p37
        %p203 = pneg %p61
        %p204 = pneg %p58
        %p205 = pneg %p82
        %p206 = pneg %p79
        %p207 = pneg %p103
        %p208 = pneg %p100
        %p209 = pneg %p124
        %p210 = pneg %p121
        %p211 = pneg %p150
        %p212 = pneg %p147
        %s213 = sand.u32 %s137, 1
        %s214 = scalar_lea.sflag [#allocation3], %s213
        %s215 = sand.u32 %s137, 1
        %s216 = smul.addr %s215, 4
        %s217 = scalar_lea.vmem [#allocation2], %s216
        %p218 = scmp.lt.s32.totalorder %s19, 1
        %s219 = scalar_select %p218, %s19, 1
        %s220 = smul.addr %s219, 8
        %s221 = smul.addr %s220, 8
        %s222 = scalar_lea.vmem %s0, %s221
        %v223 = vld [vmem:[%s222] sm:$0xff]
        %v224 = vld [vmem:[%s222 + $0x8] sm:$0xff]
        %v225 = vld [vmem:[%s222 + $0x10] sm:$0xff]
        %v226 = vld [vmem:[%s222 + $0x18] sm:$0xff]
        %v227 = vld [vmem:[%s222 + $0x20] sm:$0xff]
        %v228 = vld [vmem:[%s222 + $0x28] sm:$0xff]
        %v229 = vld [vmem:[%s222 + $0x30] sm:$0xff]
        %v230 = vld [vmem:[%s222 + $0x38] sm:$0xff]
        %v231 = vld [vmem:[%s2] sm:$0x1]
        %v233 = vlaneseq
        %v234 = vshrl.u32 %v233, 7
        %v235 = vsub.s32 0, %v234
        %v236 = vrot.slane %v231, %v235
        %v238 = vld [vmem:[%s1] sm:$0xff]
        %v239 = vld [vmem:[%s1 + $0x8] sm:$0xff]
        %v240 = vld [vmem:[%s1 + $0x10] sm:$0xff]
        %v241 = vld [vmem:[%s1 + $0x18] sm:$0xff]
        %v242 = vld [vmem:[%s1 + $0x20] sm:$0xff]
        %v243 = vld [vmem:[%s1 + $0x28] sm:$0xff]
        %v244 = vld [vmem:[%s1 + $0x30] sm:$0xff]
        %v245 = vld [vmem:[%s1 + $0x38] sm:$0xff]
        %v246 = vld [vmem:[%s1 + $0x40] sm:$0xff]
        %v247 = vld [vmem:[%s1 + $0x48] sm:$0xff]
        %v248 = vld [vmem:[%s1 + $0x50] sm:$0xff]
        %v249 = vld [vmem:[%s1 + $0x58] sm:$0xff]
        %v250 = vld [vmem:[%s1 + $0x60] sm:$0xff]
        %v251 = vld [vmem:[%s1 + $0x68] sm:$0xff]
        %v252 = vld [vmem:[%s1 + $0x70] sm:$0xff]
        %v253 = vld [vmem:[%s1 + $0x78] sm:$0xff]
        %v254 = vld [vmem:[%s1 + $0x80] sm:$0xff]
        %v255 = vld [vmem:[%s1 + $0x88] sm:$0xff]
        %v256 = vld [vmem:[%s1 + $0x90] sm:$0xff]
        %v257 = vld [vmem:[%s1 + $0x98] sm:$0xff]
        %v258 = vld [vmem:[%s1 + $0xa0] sm:$0xff]
        %v259 = vld [vmem:[%s1 + $0xa8] sm:$0xff]
        %v260 = vld [vmem:[%s1 + $0xb0] sm:$0xff]
        %v261 = vld [vmem:[%s1 + $0xb8] sm:$0xff]
        %v262 = vld [vmem:[%s1 + $0xc0] sm:$0xff]
        %v263 = vld [vmem:[%s1 + $0xc8] sm:$0xff]
        %v264 = vld [vmem:[%s1 + $0xd0] sm:$0xff]
        %v265 = vld [vmem:[%s1 + $0xd8] sm:$0xff]
        %v266 = vld [vmem:[%s1 + $0xe0] sm:$0xff]
        %v267 = vld [vmem:[%s1 + $0xe8] sm:$0xff]
        %v268 = vld [vmem:[%s1 + $0xf0] sm:$0xff]
        %v269 = vld [vmem:[%s1 + $0xf8] sm:$0xff]
        %270 = vmatprep.subr.mxu0 0.0
        %271 = vmatpush1.msra.mxu0 %v238
        %272 = vmatprep.subr.mxu0 0.0
        %273 = vmatpush1.msra.mxu0 %v239
        %274 = vmatprep.subr.mxu0 0.0
        %275 = vmatpush1.msra.mxu0 %v240
        %276 = vmatprep.subr.mxu0 0.0
        %277 = vmatpush1.msra.mxu0 %v241
        %278 = vmatprep.subr.mxu0 0.0
        %279 = vmatpush1.msra.mxu0 %v242
        %280 = vmatprep.subr.mxu0 0.0
        %281 = vmatpush1.msra.mxu0 %v243
        %282 = vmatprep.subr.mxu0 0.0
        %283 = vmatpush1.msra.mxu0 %v244
        %284 = vmatprep.subr.mxu0 0.0
        %285 = vmatpush1.msra.mxu0 %v245
        %286 = vmatprep.subr.mxu0 0.0
        %287 = vmatpush1.msra.mxu0 %v246
        %288 = vmatprep.subr.mxu0 0.0
        %289 = vmatpush1.msra.mxu0 %v247
        %290 = vmatprep.subr.mxu0 0.0
        %291 = vmatpush1.msra.mxu0 %v248
        %292 = vmatprep.subr.mxu0 0.0
        %293 = vmatpush1.msra.mxu0 %v249
        %294 = vmatprep.subr.mxu0 0.0
        %295 = vmatpush1.msra.mxu0 %v250
        %296 = vmatprep.subr.mxu0 0.0
        %297 = vmatpush1.msra.mxu0 %v251
        %298 = vmatprep.subr.mxu0 0.0
        %299 = vmatpush1.msra.mxu0 %v252
        %300 = vmatprep.subr.mxu0 0.0
        %301 = vmatpush1.msra.mxu0 %v253
        %302 = vmatprep.subr.mxu0 0.0
        %303 = vmatpush1.msra.mxu0 %v254
        %304 = vmatprep.subr.mxu0 0.0
        %305 = vmatpush1.msra.mxu0 %v255
        %306 = vmatprep.subr.mxu0 0.0
        %307 = vmatpush1.msra.mxu0 %v256
        %308 = vmatprep.subr.mxu0 0.0
        %309 = vmatpush1.msra.mxu0 %v257
        %310 = vmatprep.subr.mxu0 0.0
        %311 = vmatpush1.msra.mxu0 %v258
        %312 = vmatprep.subr.mxu0 0.0
        %313 = vmatpush1.msra.mxu0 %v259
        %314 = vmatprep.subr.mxu0 0.0
        %315 = vmatpush1.msra.mxu0 %v260
        %316 = vmatprep.subr.mxu0 0.0
        %317 = vmatpush1.msra.mxu0 %v261
        %318 = vmatprep.subr.mxu0 0.0
        %319 = vmatpush1.msra.mxu0 %v262
        %320 = vmatprep.subr.mxu0 0.0
        %321 = vmatpush1.msra.mxu0 %v263
        %322 = vmatprep.subr.mxu0 0.0
        %323 = vmatpush1.msra.mxu0 %v264
        %324 = vmatprep.subr.mxu0 0.0
        %325 = vmatpush1.msra.mxu0 %v265
        %326 = vmatprep.subr.mxu0 0.0
        %327 = vmatpush1.msra.mxu0 %v266
        %328 = vmatprep.subr.mxu0 0.0
        %329 = vmatpush1.msra.mxu0 %v267
        %330 = vmatprep.subr.mxu0 0.0
        %331 = vmatpush1.msra.mxu0 %v268
        %332 = vmatprep.subr.mxu0 0.0
        %333 = vmatpush1.msra.mxu0 %v269
        %334 = vmatprep.mubr.f32.mxu0 %v224
        %335 = vmatmul.mubr.f32.gmra.mrb[0].mxu0 %v223
        %v336 = vpop.f32.mrb[0].mxu0
        %v337 = vadd.f32 0.0, %v336
        %v338 = vpop.f32.mrb[0].mxu0
        %339 = vdwg.mxu0
        %v340 = vadd.f32 %v236, %v337
        %v341 = vld [vmem:[%s1 + $0x100] sm:$0xff]
        %v342 = vld [vmem:[%s1 + $0x108] sm:$0xff]
        %v343 = vld [vmem:[%s1 + $0x110] sm:$0xff]
        %v344 = vld [vmem:[%s1 + $0x118] sm:$0xff]
        %v345 = vld [vmem:[%s1 + $0x120] sm:$0xff]
        %v346 = vld [vmem:[%s1 + $0x128] sm:$0xff]
        %v347 = vld [vmem:[%s1 + $0x130] sm:$0xff]
        %v348 = vld [vmem:[%s1 + $0x138] sm:$0xff]
        %v349 = vld [vmem:[%s1 + $0x140] sm:$0xff]
        %v350 = vld [vmem:[%s1 + $0x148] sm:$0xff]
        %v351 = vld [vmem:[%s1 + $0x150] sm:$0xff]
        %v352 = vld [vmem:[%s1 + $0x158] sm:$0xff]
        %v353 = vld [vmem:[%s1 + $0x160] sm:$0xff]
        %v354 = vld [vmem:[%s1 + $0x168] sm:$0xff]
        %v355 = vld [vmem:[%s1 + $0x170] sm:$0xff]
        %v356 = vld [vmem:[%s1 + $0x178] sm:$0xff]
        %v357 = vld [vmem:[%s1 + $0x180] sm:$0xff]
        %v358 = vld [vmem:[%s1 + $0x188] sm:$0xff]
        %v359 = vld [vmem:[%s1 + $0x190] sm:$0xff]
        %v360 = vld [vmem:[%s1 + $0x198] sm:$0xff]
        %v361 = vld [vmem:[%s1 + $0x1a0] sm:$0xff]
        %v362 = vld [vmem:[%s1 + $0x1a8] sm:$0xff]
        %v363 = vld [vmem:[%s1 + $0x1b0] sm:$0xff]
        %v364 = vld [vmem:[%s1 + $0x1b8] sm:$0xff]
        %v365 = vld [vmem:[%s1 + $0x1c0] sm:$0xff]
        %v366 = vld [vmem:[%s1 + $0x1c8] sm:$0xff]
        %v367 = vld [vmem:[%s1 + $0x1d0] sm:$0xff]
        %v368 = vld [vmem:[%s1 + $0x1d8] sm:$0xff]
        %v369 = vld [vmem:[%s1 + $0x1e0] sm:$0xff]
        %v370 = vld [vmem:[%s1 + $0x1e8] sm:$0xff]
        %v371 = vld [vmem:[%s1 + $0x1f0] sm:$0xff]
        %v372 = vld [vmem:[%s1 + $0x1f8] sm:$0xff]
        %373 = vmatprep.subr.mxu0 0.0
        %374 = vmatpush1.msra.mxu0 %v341
        %375 = vmatprep.subr.mxu0 0.0
        %376 = vmatpush1.msra.mxu0 %v342
        %377 = vmatprep.subr.mxu0 0.0
        %378 = vmatpush1.msra.mxu0 %v343
        %379 = vmatprep.subr.mxu0 0.0
        %380 = vmatpush1.msra.mxu0 %v344
        %381 = vmatprep.subr.mxu0 0.0
        %382 = vmatpush1.msra.mxu0 %v345
        %383 = vmatprep.subr.mxu0 0.0
        %384 = vmatpush1.msra.mxu0 %v346
        %385 = vmatprep.subr.mxu0 0.0
        %386 = vmatpush1.msra.mxu0 %v347
        %387 = vmatprep.subr.mxu0 0.0
        %388 = vmatpush1.msra.mxu0 %v348
        %389 = vmatprep.subr.mxu0 0.0
        %390 = vmatpush1.msra.mxu0 %v349
        %391 = vmatprep.subr.mxu0 0.0
        %392 = vmatpush1.msra.mxu0 %v350
        %393 = vmatprep.subr.mxu0 0.0
        %394 = vmatpush1.msra.mxu0 %v351
        %395 = vmatprep.subr.mxu0 0.0
        %396 = vmatpush1.msra.mxu0 %v352
        %397 = vmatprep.subr.mxu0 0.0
        %398 = vmatpush1.msra.mxu0 %v353
        %399 = vmatprep.subr.mxu0 0.0
        %400 = vmatpush1.msra.mxu0 %v354
        %401 = vmatprep.subr.mxu0 0.0
        %402 = vmatpush1.msra.mxu0 %v355
        %403 = vmatprep.subr.mxu0 0.0
        %404 = vmatpush1.msra.mxu0 %v356
        %405 = vmatprep.subr.mxu0 0.0
        %406 = vmatpush1.msra.mxu0 %v357
        %407 = vmatprep.subr.mxu0 0.0
        %408 = vmatpush1.msra.mxu0 %v358
        %409 = vmatprep.subr.mxu0 0.0
        %410 = vmatpush1.msra.mxu0 %v359
        %411 = vmatprep.subr.mxu0 0.0
        %412 = vmatpush1.msra.mxu0 %v360
        %413 = vmatprep.subr.mxu0 0.0
        %414 = vmatpush1.msra.mxu0 %v361
        %415 = vmatprep.subr.mxu0 0.0
        %416 = vmatpush1.msra.mxu0 %v362
        %417 = vmatprep.subr.mxu0 0.0
        %418 = vmatpush1.msra.mxu0 %v363
        %419 = vmatprep.subr.mxu0 0.0
        %420 = vmatpush1.msra.mxu0 %v364
        %421 = vmatprep.subr.mxu0 0.0
        %422 = vmatpush1.msra.mxu0 %v365
        %423 = vmatprep.subr.mxu0 0.0
        %424 = vmatpush1.msra.mxu0 %v366
        %425 = vmatprep.subr.mxu0 0.0
        %426 = vmatpush1.msra.mxu0 %v367
        %427 = vmatprep.subr.mxu0 0.0
        %428 = vmatpush1.msra.mxu0 %v368
        %429 = vmatprep.subr.mxu0 0.0
        %430 = vmatpush1.msra.mxu0 %v369
        %431 = vmatprep.subr.mxu0 0.0
        %432 = vmatpush1.msra.mxu0 %v370
        %433 = vmatprep.subr.mxu0 0.0
        %434 = vmatpush1.msra.mxu0 %v371
        %435 = vmatprep.subr.mxu0 0.0
        %436 = vmatpush1.msra.mxu0 %v372
        %437 = vmatprep.mubr.f32.mxu0 %v226
        %438 = vmatmul.mubr.f32.gmra.mrb[0].mxu0 %v225
        %v439 = vpop.f32.mrb[0].mxu0
        %v440 = vadd.f32 0.0, %v439
        %v441 = vpop.f32.mrb[0].mxu0
        %442 = vdwg.mxu0
        %v443 = vadd.f32 %v340, %v440
        %v444 = vld [vmem:[%s1 + $0x200] sm:$0xff]
        %v445 = vld [vmem:[%s1 + $0x208] sm:$0xff]
        %v446 = vld [vmem:[%s1 + $0x210] sm:$0xff]
        %v447 = vld [vmem:[%s1 + $0x218] sm:$0xff]
        %v448 = vld [vmem:[%s1 + $0x220] sm:$0xff]
        %v449 = vld [vmem:[%s1 + $0x228] sm:$0xff]
        %v450 = vld [vmem:[%s1 + $0x230] sm:$0xff]
        %v451 = vld [vmem:[%s1 + $0x238] sm:$0xff]
        %v452 = vld [vmem:[%s1 + $0x240] sm:$0xff]
        %v453 = vld [vmem:[%s1 + $0x248] sm:$0xff]
        %v454 = vld [vmem:[%s1 + $0x250] sm:$0xff]
        %v455 = vld [vmem:[%s1 + $0x258] sm:$0xff]
        %v456 = vld [vmem:[%s1 + $0x260] sm:$0xff]
        %v457 = vld [vmem:[%s1 + $0x268] sm:$0xff]
        %v458 = vld [vmem:[%s1 + $0x270] sm:$0xff]
        %v459 = vld [vmem:[%s1 + $0x278] sm:$0xff]
        %v460 = vld [vmem:[%s1 + $0x280] sm:$0xff]
        %v461 = vld [vmem:[%s1 + $0x288] sm:$0xff]
        %v462 = vld [vmem:[%s1 + $0x290] sm:$0xff]
        %v463 = vld [vmem:[%s1 + $0x298] sm:$0xff]
        %v464 = vld [vmem:[%s1 + $0x2a0] sm:$0xff]
        %v465 = vld [vmem:[%s1 + $0x2a8] sm:$0xff]
        %v466 = vld [vmem:[%s1 + $0x2b0] sm:$0xff]
        %v467 = vld [vmem:[%s1 + $0x2b8] sm:$0xff]
        %v468 = vld [vmem:[%s1 + $0x2c0] sm:$0xff]
        %v469 = vld [vmem:[%s1 + $0x2c8] sm:$0xff]
        %v470 = vld [vmem:[%s1 + $0x2d0] sm:$0xff]
        %v471 = vld [vmem:[%s1 + $0x2d8] sm:$0xff]
        %v472 = vld [vmem:[%s1 + $0x2e0] sm:$0xff]
        %v473 = vld [vmem:[%s1 + $0x2e8] sm:$0xff]
        %v474 = vld [vmem:[%s1 + $0x2f0] sm:$0xff]
        %v475 = vld [vmem:[%s1 + $0x2f8] sm:$0xff]
        %476 = vmatprep.subr.mxu0 0.0
        %477 = vmatpush1.msra.mxu0 %v444
        %478 = vmatprep.subr.mxu0 0.0
        %479 = vmatpush1.msra.mxu0 %v445
        %480 = vmatprep.subr.mxu0 0.0
        %481 = vmatpush1.msra.mxu0 %v446
        %482 = vmatprep.subr.mxu0 0.0
        %483 = vmatpush1.msra.mxu0 %v447
        %484 = vmatprep.subr.mxu0 0.0
        %485 = vmatpush1.msra.mxu0 %v448
        %486 = vmatprep.subr.mxu0 0.0
        %487 = vmatpush1.msra.mxu0 %v449
        %488 = vmatprep.subr.mxu0 0.0
        %489 = vmatpush1.msra.mxu0 %v450
        %490 = vmatprep.subr.mxu0 0.0
        %491 = vmatpush1.msra.mxu0 %v451
        %492 = vmatprep.subr.mxu0 0.0
        %493 = vmatpush1.msra.mxu0 %v452
        %494 = vmatprep.subr.mxu0 0.0
        %495 = vmatpush1.msra.mxu0 %v453
        %496 = vmatprep.subr.mxu0 0.0
        %497 = vmatpush1.msra.mxu0 %v454
        %498 = vmatprep.subr.mxu0 0.0
        %499 = vmatpush1.msra.mxu0 %v455
        %500 = vmatprep.subr.mxu0 0.0
        %501 = vmatpush1.msra.mxu0 %v456
        %502 = vmatprep.subr.mxu0 0.0
        %503 = vmatpush1.msra.mxu0 %v457
        %504 = vmatprep.subr.mxu0 0.0
        %505 = vmatpush1.msra.mxu0 %v458
        %506 = vmatprep.subr.mxu0 0.0
        %507 = vmatpush1.msra.mxu0 %v459
        %508 = vmatprep.subr.mxu0 0.0
        %509 = vmatpush1.msra.mxu0 %v460
        %510 = vmatprep.subr.mxu0 0.0
        %511 = vmatpush1.msra.mxu0 %v461
        %512 = vmatprep.subr.mxu0 0.0
        %513 = vmatpush1.msra.mxu0 %v462
        %514 = vmatprep.subr.mxu0 0.0
        %515 = vmatpush1.msra.mxu0 %v463
        %516 = vmatprep.subr.mxu0 0.0
        %517 = vmatpush1.msra.mxu0 %v464
        %518 = vmatprep.subr.mxu0 0.0
        %519 = vmatpush1.msra.mxu0 %v465
        %520 = vmatprep.subr.mxu0 0.0
        %521 = vmatpush1.msra.mxu0 %v466
        %522 = vmatprep.subr.mxu0 0.0
        %523 = vmatpush1.msra.mxu0 %v467
        %524 = vmatprep.subr.mxu0 0.0
        %525 = vmatpush1.msra.mxu0 %v468
        %526 = vmatprep.subr.mxu0 0.0
        %527 = vmatpush1.msra.mxu0 %v469
        %528 = vmatprep.subr.mxu0 0.0
        %529 = vmatpush1.msra.mxu0 %v470
        %530 = vmatprep.subr.mxu0 0.0
        %531 = vmatpush1.msra.mxu0 %v471
        %532 = vmatprep.subr.mxu0 0.0
        %533 = vmatpush1.msra.mxu0 %v472
        %534 = vmatprep.subr.mxu0 0.0
        %535 = vmatpush1.msra.mxu0 %v473
        %536 = vmatprep.subr.mxu0 0.0
        %537 = vmatpush1.msra.mxu0 %v474
        %538 = vmatprep.subr.mxu0 0.0
        %539 = vmatpush1.msra.mxu0 %v475
        %540 = vmatprep.mubr.f32.mxu0 %v228
        %541 = vmatmul.mubr.f32.gmra.mrb[0].mxu0 %v227
        %v542 = vpop.f32.mrb[0].mxu0
        %v543 = vadd.f32 0.0, %v542
        %v544 = vpop.f32.mrb[0].mxu0
        %545 = vdwg.mxu0
        %v546 = vadd.f32 %v443, %v543
        %v547 = vld [vmem:[%s1 + $0x300] sm:$0xff]
        %v548 = vld [vmem:[%s1 + $0x308] sm:$0xff]
        %v549 = vld [vmem:[%s1 + $0x310] sm:$0xff]
        %v550 = vld [vmem:[%s1 + $0x318] sm:$0xff]
        %v551 = vld [vmem:[%s1 + $0x320] sm:$0xff]
        %v552 = vld [vmem:[%s1 + $0x328] sm:$0xff]
        %v553 = vld [vmem:[%s1 + $0x330] sm:$0xff]
        %v554 = vld [vmem:[%s1 + $0x338] sm:$0xff]
        %v555 = vld [vmem:[%s1 + $0x340] sm:$0xff]
        %v556 = vld [vmem:[%s1 + $0x348] sm:$0xff]
        %v557 = vld [vmem:[%s1 + $0x350] sm:$0xff]
        %v558 = vld [vmem:[%s1 + $0x358] sm:$0xff]
        %v559 = vld [vmem:[%s1 + $0x360] sm:$0xff]
        %v560 = vld [vmem:[%s1 + $0x368] sm:$0xff]
        %v561 = vld [vmem:[%s1 + $0x370] sm:$0xff]
        %v562 = vld [vmem:[%s1 + $0x378] sm:$0xff]
        %v563 = vld [vmem:[%s1 + $0x380] sm:$0xff]
        %v564 = vld [vmem:[%s1 + $0x388] sm:$0xff]
        %v565 = vld [vmem:[%s1 + $0x390] sm:$0xff]
        %v566 = vld [vmem:[%s1 + $0x398] sm:$0xff]
        %v567 = vld [vmem:[%s1 + $0x3a0] sm:$0xff]
        %v568 = vld [vmem:[%s1 + $0x3a8] sm:$0xff]
        %v569 = vld [vmem:[%s1 + $0x3b0] sm:$0xff]
        %v570 = vld [vmem:[%s1 + $0x3b8] sm:$0xff]
        %v571 = vld [vmem:[%s1 + $0x3c0] sm:$0xff]
        %v572 = vld [vmem:[%s1 + $0x3c8] sm:$0xff]
        %v573 = vld [vmem:[%s1 + $0x3d0] sm:$0xff]
        %v574 = vld [vmem:[%s1 + $0x3d8] sm:$0xff]
        %v575 = vld [vmem:[%s1 + $0x3e0] sm:$0xff]
        %v576 = vld [vmem:[%s1 + $0x3e8] sm:$0xff]
        %v577 = vld [vmem:[%s1 + $0x3f0] sm:$0xff]
        %v578 = vld [vmem:[%s1 + $0x3f8] sm:$0xff]
        %579 = vmatprep.subr.mxu0 0.0
        %580 = vmatpush1.msra.mxu0 %v547
        %581 = vmatprep.subr.mxu0 0.0
        %582 = vmatpush1.msra.mxu0 %v548
        %583 = vmatprep.subr.mxu0 0.0
        %584 = vmatpush1.msra.mxu0 %v549
        %585 = vmatprep.subr.mxu0 0.0
        %586 = vmatpush1.msra.mxu0 %v550
        %587 = vmatprep.subr.mxu0 0.0
        %588 = vmatpush1.msra.mxu0 %v551
        %589 = vmatprep.subr.mxu0 0.0
        %590 = vmatpush1.msra.mxu0 %v552
        %591 = vmatprep.subr.mxu0 0.0
        %592 = vmatpush1.msra.mxu0 %v553
        %593 = vmatprep.subr.mxu0 0.0
        %594 = vmatpush1.msra.mxu0 %v554
        %595 = vmatprep.subr.mxu0 0.0
        %596 = vmatpush1.msra.mxu0 %v555
        %597 = vmatprep.subr.mxu0 0.0
        %598 = vmatpush1.msra.mxu0 %v556
        %599 = vmatprep.subr.mxu0 0.0
        %600 = vmatpush1.msra.mxu0 %v557
        %601 = vmatprep.subr.mxu0 0.0
        %602 = vmatpush1.msra.mxu0 %v558
        %603 = vmatprep.subr.mxu0 0.0
        %604 = vmatpush1.msra.mxu0 %v559
        %605 = vmatprep.subr.mxu0 0.0
        %606 = vmatpush1.msra.mxu0 %v560
        %607 = vmatprep.subr.mxu0 0.0
        %608 = vmatpush1.msra.mxu0 %v561
        %609 = vmatprep.subr.mxu0 0.0
        %610 = vmatpush1.msra.mxu0 %v562
        %611 = vmatprep.subr.mxu0 0.0
        %612 = vmatpush1.msra.mxu0 %v563
        %613 = vmatprep.subr.mxu0 0.0
        %614 = vmatpush1.msra.mxu0 %v564
        %615 = vmatprep.subr.mxu0 0.0
        %616 = vmatpush1.msra.mxu0 %v565
        %617 = vmatprep.subr.mxu0 0.0
        %618 = vmatpush1.msra.mxu0 %v566
        %619 = vmatprep.subr.mxu0 0.0
        %620 = vmatpush1.msra.mxu0 %v567
        %621 = vmatprep.subr.mxu0 0.0
        %622 = vmatpush1.msra.mxu0 %v568
        %623 = vmatprep.subr.mxu0 0.0
        %624 = vmatpush1.msra.mxu0 %v569
        %625 = vmatprep.subr.mxu0 0.0
        %626 = vmatpush1.msra.mxu0 %v570
        %627 = vmatprep.subr.mxu0 0.0
        %628 = vmatpush1.msra.mxu0 %v571
        %629 = vmatprep.subr.mxu0 0.0
        %630 = vmatpush1.msra.mxu0 %v572
        %631 = vmatprep.subr.mxu0 0.0
        %632 = vmatpush1.msra.mxu0 %v573
        %633 = vmatprep.subr.mxu0 0.0
        %634 = vmatpush1.msra.mxu0 %v574
        %635 = vmatprep.subr.mxu0 0.0
        %636 = vmatpush1.msra.mxu0 %v575
        %637 = vmatprep.subr.mxu0 0.0
        %638 = vmatpush1.msra.mxu0 %v576
        %639 = vmatprep.subr.mxu0 0.0
        %640 = vmatpush1.msra.mxu0 %v577
        %641 = vmatprep.subr.mxu0 0.0
        %642 = vmatpush1.msra.mxu0 %v578
        %643 = vmatprep.mubr.f32.mxu0 %v230
        %644 = vmatmul.mubr.f32.gmra.mrb[0].mxu0 %v229
        %v645 = vpop.f32.mrb[0].mxu0
        %v646 = vadd.f32 0.0, %v645
        %v647 = vpop.f32.mrb[0].mxu0
        %648 = vdwg.mxu0
        %v649 = vadd.f32 %v546, %v646
        %v650 = vld [vmem:[%s3] sm:$0xff]
        %v651 = vld [vmem:[%s3 + $0x8] sm:$0xff]
        %v652 = vld [vmem:[%s3 + $0x10] sm:$0xff]
        %v653 = vld [vmem:[%s4] sm:$0xff]
        %v654 = vld [vmem:[%s4 + $0x8] sm:$0xff]
        %v655 = vld [vmem:[%s4 + $0x10] sm:$0xff]
        %657 = vset.pattern.permute.xlu0 0
        %658 = vperm.xlu0 %657, %v653
        %v659 = vpop.permute.xlu0 %658
        %662 = vset.pattern.permute.xlu0 0
        %663 = vperm.xlu0 %662, %v654
        %v664 = vpop.permute.xlu0 %663
        %667 = vset.pattern.permute.xlu0 0
        %668 = vperm.xlu0 %667, %v655
        %v669 = vpop.permute.xlu0 %668
        %vm671 = vcmask 31744
        %v673 = vsel %vm671, %v650, 0
        %v676 = vsel %vm671, %v651, 0
        %v679 = vsel %vm671, %v652, 0
        %v682 = vsel %vm671, %v649, 0
        %684 = vmatprep.subr.mxu0 0.0
        %685 = vmatpush1.xpose.msra.mxu0 %v682
        %686 = vmatprep.subr.mxu0 0.0
        %687 = vmatpush1.xpose.msra.mxu0 0.0
        %688 = vmatprep.subr.mxu0 0.0
        %689 = vmatpush1.xpose.msra.mxu0 0.0
        %690 = vmatprep.subr.mxu0 0.0
        %691 = vmatpush1.xpose.msra.mxu0 0.0
        %692 = vmatprep.subr.mxu0 0.0
        %693 = vmatpush1.xpose.msra.mxu0 0.0
        %694 = vmatprep.subr.mxu0 0.0
        %695 = vmatpush1.xpose.msra.mxu0 0.0
        %696 = vmatprep.subr.mxu0 0.0
        %697 = vmatpush1.xpose.msra.mxu0 0.0
        %698 = vmatprep.subr.mxu0 0.0
        %699 = vmatpush1.xpose.msra.mxu0 0.0
        %700 = vmatprep.subr.mxu0 0.0
        %701 = vmatpush1.xpose.msra.mxu0 0.0
        %702 = vmatprep.subr.mxu0 0.0
        %703 = vmatpush1.xpose.msra.mxu0 0.0
        %704 = vmatprep.subr.mxu0 0.0
        %705 = vmatpush1.xpose.msra.mxu0 0.0
        %706 = vmatprep.subr.mxu0 0.0
        %707 = vmatpush1.xpose.msra.mxu0 0.0
        %708 = vmatprep.subr.mxu0 0.0
        %709 = vmatpush1.xpose.msra.mxu0 0.0
        %710 = vmatprep.subr.mxu0 0.0
        %711 = vmatpush1.xpose.msra.mxu0 0.0
        %712 = vmatprep.subr.mxu0 0.0
        %713 = vmatpush1.xpose.msra.mxu0 0.0
        %714 = vmatprep.subr.mxu0 0.0
        %715 = vmatpush1.xpose.msra.mxu0 0.0
        %716 = vmatprep.subr.mxu0 0.0
        %717 = vmatpush1.xpose.msra.mxu0 0.0
        %718 = vmatprep.subr.mxu0 0.0
        %719 = vmatpush1.xpose.msra.mxu0 0.0
        %720 = vmatprep.subr.mxu0 0.0
        %721 = vmatpush1.xpose.msra.mxu0 0.0
        %722 = vmatprep.subr.mxu0 0.0
        %723 = vmatpush1.xpose.msra.mxu0 0.0
        %724 = vmatprep.subr.mxu0 0.0
        %725 = vmatpush1.xpose.msra.mxu0 0.0
        %726 = vmatprep.subr.mxu0 0.0
        %727 = vmatpush1.xpose.msra.mxu0 0.0
        %728 = vmatprep.subr.mxu0 0.0
        %729 = vmatpush1.xpose.msra.mxu0 0.0
        %730 = vmatprep.subr.mxu0 0.0
        %731 = vmatpush1.xpose.msra.mxu0 0.0
        %732 = vmatprep.subr.mxu0 0.0
        %733 = vmatpush1.xpose.msra.mxu0 0.0
        %734 = vmatprep.subr.mxu0 0.0
        %735 = vmatpush1.xpose.msra.mxu0 0.0
        %736 = vmatprep.subr.mxu0 0.0
        %737 = vmatpush1.xpose.msra.mxu0 0.0
        %738 = vmatprep.subr.mxu0 0.0
        %739 = vmatpush1.xpose.msra.mxu0 0.0
        %740 = vmatprep.subr.mxu0 0.0
        %741 = vmatpush1.xpose.msra.mxu0 0.0
        %742 = vmatprep.subr.mxu0 0.0
        %743 = vmatpush1.xpose.msra.mxu0 0.0
        %744 = vmatprep.subr.mxu0 0.0
        %745 = vmatpush1.xpose.msra.mxu0 0.0
        %746 = vmatprep.subr.mxu0 0.0
        %747 = vmatpush1.xpose.msra.mxu0 0.0
        %748 = vmatprep.mubr.f32.mxu0 0.0
        %749 = vmatmul.mubr.f32.gmra.mrb[0].mxu0 %v673
        %v750 = vpop.f32.mrb[0].mxu0
        %v751 = vadd.f32 %v659, %v750
        %v752 = vpop.f32.mrb[0].mxu0
        %753 = vmatprep.mubr.f32.mxu0 0.0
        %754 = vmatmul.mubr.f32.gmra.mrb[0].mxu0 %v676
        %v755 = vpop.f32.mrb[0].mxu0
        %v756 = vadd.f32 %v664, %v755
        %v757 = vpop.f32.mrb[0].mxu0
        %758 = vmatprep.mubr.f32.mxu0 0.0
        %759 = vmatmul.mubr.f32.gmra.mrb[0].mxu0 %v679
        %v760 = vpop.f32.mrb[0].mxu0
        %v761 = vadd.f32 %v669, %v760
        %v762 = vpop.f32.mrb[0].mxu0
        %763 = vdwg.mxu0
        %764 = vxpose.xlu0.b32.start [1/16] %v751, 128
        %765 = vxpose.xlu0.b32.cont [2/16] 0.0, 128
        %766 = vxpose.xlu0.b32.cont [3/16] 0.0, 128
        %767 = vxpose.xlu0.b32.cont [4/16] 0.0, 128
        %768 = vxpose.xlu0.b32.cont [5/16] 0.0, 128
        %769 = vxpose.xlu0.b32.cont [6/16] 0.0, 128
        %770 = vxpose.xlu0.b32.cont [7/16] 0.0, 128
        %771 = vxpose.xlu0.b32.cont [8/16] 0.0, 128
        %772 = vxpose.xlu0.b32.cont [9/16] 0.0, 128
        %773 = vxpose.xlu0.b32.cont [10/16] 0.0, 128
        %774 = vxpose.xlu0.b32.cont [11/16] 0.0, 128
        %775 = vxpose.xlu0.b32.cont [12/16] 0.0, 128
        %776 = vxpose.xlu0.b32.cont [13/16] 0.0, 128
        %777 = vxpose.xlu0.b32.cont [14/16] 0.0, 128
        %778 = vxpose.xlu0.b32.cont [15/16] 0.0, 128
        %779 = vxpose.xlu0.b32.end [16/16] 0.0, 128
        %v780 = vpop.trf.xlu0
        %v781 = vpop.trf.xlu0
        %v782 = vpop.trf.xlu0
        %v783 = vpop.trf.xlu0
        %v784 = vpop.trf.xlu0
        %v785 = vpop.trf.xlu0
        %v786 = vpop.trf.xlu0
        %v787 = vpop.trf.xlu0
        %v788 = vpop.trf.xlu0
        %v789 = vpop.trf.xlu0
        %v790 = vpop.trf.xlu0
        %v791 = vpop.trf.xlu0
        %v792 = vpop.trf.xlu0
        %v793 = vpop.trf.xlu0
        %v794 = vpop.trf.xlu0
        %v795 = vpop.trf.xlu0
        %v797 = vsel %vm671, %v780, 0
        %vm799 = vcmask 1043456
        %v801 = vsel %vm799, %v756, 0
        %803 = vmatprep.subr.mxu0 0.0
        %804 = vmatpush1.msra.mxu0 %v801
        %805 = vmatprep.subr.mxu0 0.0
        %806 = vmatpush1.msra.mxu0 0.0
        %807 = vmatprep.subr.mxu0 0.0
        %808 = vmatpush1.msra.mxu0 0.0
        %809 = vmatprep.subr.mxu0 0.0
        %810 = vmatpush1.msra.mxu0 0.0
        %811 = vmatprep.subr.mxu0 0.0
        %812 = vmatpush1.msra.mxu0 0.0
        %813 = vmatprep.subr.mxu0 0.0
        %814 = vmatpush1.msra.mxu0 0.0
        %815 = vmatprep.subr.mxu0 0.0
        %816 = vmatpush1.msra.mxu0 0.0
        %817 = vmatprep.subr.mxu0 0.0
        %818 = vmatpush1.msra.mxu0 0.0
        %819 = vmatprep.subr.mxu0 0.0
        %820 = vmatpush1.msra.mxu0 0.0
        %821 = vmatprep.subr.mxu0 0.0
        %822 = vmatpush1.msra.mxu0 0.0
        %823 = vmatprep.subr.mxu0 0.0
        %824 = vmatpush1.msra.mxu0 0.0
        %825 = vmatprep.subr.mxu0 0.0
        %826 = vmatpush1.msra.mxu0 0.0
        %827 = vmatprep.subr.mxu0 0.0
        %828 = vmatpush1.msra.mxu0 0.0
        %829 = vmatprep.subr.mxu0 0.0
        %830 = vmatpush1.msra.mxu0 0.0
        %831 = vmatprep.subr.mxu0 0.0
        %832 = vmatpush1.msra.mxu0 0.0
        %833 = vmatprep.subr.mxu0 0.0
        %834 = vmatpush1.msra.mxu0 0.0
        %835 = vmatprep.subr.mxu0 0.0
        %836 = vmatpush1.msra.mxu0 0.0
        %837 = vmatprep.subr.mxu0 0.0
        %838 = vmatpush1.msra.mxu0 0.0
        %839 = vmatprep.subr.mxu0 0.0
        %840 = vmatpush1.msra.mxu0 0.0
        %841 = vmatprep.subr.mxu0 0.0
        %842 = vmatpush1.msra.mxu0 0.0
        %843 = vmatprep.subr.mxu0 0.0
        %844 = vmatpush1.msra.mxu0 0.0
        %845 = vmatprep.subr.mxu0 0.0
        %846 = vmatpush1.msra.mxu0 0.0
        %847 = vmatprep.subr.mxu0 0.0
        %848 = vmatpush1.msra.mxu0 0.0
        %849 = vmatprep.subr.mxu0 0.0
        %850 = vmatpush1.msra.mxu0 0.0
        %851 = vmatprep.subr.mxu0 0.0
        %852 = vmatpush1.msra.mxu0 0.0
        %853 = vmatprep.subr.mxu0 0.0
        %854 = vmatpush1.msra.mxu0 0.0
        %855 = vmatprep.subr.mxu0 0.0
        %856 = vmatpush1.msra.mxu0 0.0
        %857 = vmatprep.subr.mxu0 0.0
        %858 = vmatpush1.msra.mxu0 0.0
        %859 = vmatprep.subr.mxu0 0.0
        %860 = vmatpush1.msra.mxu0 0.0
        %861 = vmatprep.subr.mxu0 0.0
        %862 = vmatpush1.msra.mxu0 0.0
        %863 = vmatprep.subr.mxu0 0.0
        %864 = vmatpush1.msra.mxu0 0.0
        %865 = vmatprep.subr.mxu0 0.0
        %866 = vmatpush1.msra.mxu0 0.0
        %867 = vmatprep.mubr.f32.mxu0 0.0
        %868 = vmatmul.mubr.f32.gmra.mrb[0].mxu0 %v797
        %v869 = vpop.f32.mrb[0].mxu0
        %v870 = vadd.f32 0.0, %v869
        %v871 = vpop.f32.mrb[0].mxu0
        %872 = vdwg.mxu0
        %vm873 = vcmask 64512
        %v874 = vsel %vm873, %v870, -inf
        %875 = vmax.xlane.f32.xlu0 %v874
        %v876 = vpop.xlane.xlu0 %875
        %v877 = vsub.f32 %v870, %v876
        %v878 = vmul.f32 %v877, 1.442695
        %v879 = vpow.pop %v878
        %v880 = vsel %vm873, %v879, 0.0
        %881 = vadd.xlane.f32.xlu0 %v880
        %v882 = vpop.xlane.xlu0 %881
        %v883 = vrcp.pop %v882
        %v884 = vmul.f32 %v879, %v883
        %v886 = vsel %vm873, %v761, 0
        %v889 = vsel %vm873, %v884, 0
        %891 = vmatprep.subr.mxu0 0.0
        %892 = vmatpush1.xpose.msra.mxu0 %v889
        %893 = vmatprep.subr.mxu0 0.0
        %894 = vmatpush1.xpose.msra.mxu0 0.0
        %895 = vmatprep.subr.mxu0 0.0
        %896 = vmatpush1.xpose.msra.mxu0 0.0
        %897 = vmatprep.subr.mxu0 0.0
        %898 = vmatpush1.xpose.msra.mxu0 0.0
        %899 = vmatprep.subr.mxu0 0.0
        %900 = vmatpush1.xpose.msra.mxu0 0.0
        %901 = vmatprep.subr.mxu0 0.0
        %902 = vmatpush1.xpose.msra.mxu0 0.0
        %903 = vmatprep.subr.mxu0 0.0
        %904 = vmatpush1.xpose.msra.mxu0 0.0
        %905 = vmatprep.subr.mxu0 0.0
        %906 = vmatpush1.xpose.msra.mxu0 0.0
        %907 = vmatprep.subr.mxu0 0.0
        %908 = vmatpush1.xpose.msra.mxu0 0.0
        %909 = vmatprep.subr.mxu0 0.0
        %910 = vmatpush1.xpose.msra.mxu0 0.0
        %911 = vmatprep.subr.mxu0 0.0
        %912 = vmatpush1.xpose.msra.mxu0 0.0
        %913 = vmatprep.subr.mxu0 0.0
        %914 = vmatpush1.xpose.msra.mxu0 0.0
        %915 = vmatprep.subr.mxu0 0.0
        %916 = vmatpush1.xpose.msra.mxu0 0.0
        %917 = vmatprep.subr.mxu0 0.0
        %918 = vmatpush1.xpose.msra.mxu0 0.0
        %919 = vmatprep.subr.mxu0 0.0
        %920 = vmatpush1.xpose.msra.mxu0 0.0
        %921 = vmatprep.subr.mxu0 0.0
        %922 = vmatpush1.xpose.msra.mxu0 0.0
        %923 = vmatprep.subr.mxu0 0.0
        %924 = vmatpush1.xpose.msra.mxu0 0.0
        %925 = vmatprep.subr.mxu0 0.0
        %926 = vmatpush1.xpose.msra.mxu0 0.0
        %927 = vmatprep.subr.mxu0 0.0
        %928 = vmatpush1.xpose.msra.mxu0 0.0
        %929 = vmatprep.subr.mxu0 0.0
        %930 = vmatpush1.xpose.msra.mxu0 0.0
        %931 = vmatprep.subr.mxu0 0.0
        %932 = vmatpush1.xpose.msra.mxu0 0.0
        %933 = vmatprep.subr.mxu0 0.0
        %934 = vmatpush1.xpose.msra.mxu0 0.0
        %935 = vmatprep.subr.mxu0 0.0
        %936 = vmatpush1.xpose.msra.mxu0 0.0
        %937 = vmatprep.subr.mxu0 0.0
        %938 = vmatpush1.xpose.msra.mxu0 0.0
        %939 = vmatprep.subr.mxu0 0.0
        %940 = vmatpush1.xpose.msra.mxu0 0.0
        %941 = vmatprep.subr.mxu0 0.0
        %942 = vmatpush1.xpose.msra.mxu0 0.0
        %943 = vmatprep.subr.mxu0 0.0
        %944 = vmatpush1.xpose.msra.mxu0 0.0
        %945 = vmatprep.subr.mxu0 0.0
        %946 = vmatpush1.xpose.msra.mxu0 0.0
        %947 = vmatprep.subr.mxu0 0.0
        %948 = vmatpush1.xpose.msra.mxu0 0.0
        %949 = vmatprep.subr.mxu0 0.0
        %950 = vmatpush1.xpose.msra.mxu0 0.0
        %951 = vmatprep.subr.mxu0 0.0
        %952 = vmatpush1.xpose.msra.mxu0 0.0
        %953 = vmatprep.subr.mxu0 0.0
        %954 = vmatpush1.xpose.msra.mxu0 0.0
        %955 = vmatprep.mubr.f32.mxu0 0.0
        %956 = vmatmul.mubr.f32.gmra.mrb[0].mxu0 %v886
        %v957 = vpop.f32.mrb[0].mxu0
        %v958 = vadd.f32 0.0, %v957
        %v959 = vpop.f32.mrb[0].mxu0
        %960 = vdwg.mxu0
        %vm961 = vcmask 60416
        %962 = vst.msk [vmem:[%s217] sm:$0xf] %vm961, %v958
        %s963 = sand.u32 %s137, 1
        %s964 = scalar_lea.sflag [#allocation3], %s963
        %s965 = sand.u32 %s137, 1
        %s966 = smul.addr %s965, 4
        %s967 = scalar_lea.vmem [#allocation2], %s966
        // Predicated region
        $region41: #{tpu_custom_call.1} parent=39 // pred_check
          %p968 = pneg %p147
        $region42: #{tpu_custom_call.1} parent=39 // pred_check_branch
          %970 = sbr.rel (%p968) target = $region44
        $region43: #{tpu_custom_call.1} parent=39 // pred_region
          %s972 = ssub.s32 64, 64
          %973 = vsyncadd %s964, %s972
          %s974 = smul.addr %s19, 64
          %s975 = scalar_lea.hbm %s5, %s974
          %s977 = sshll.u32 %s967, 4
          %s978 = int_to_ptr.vmem [resolvable:$true] %s977
          %980 = dma.vmem_to_hbm [thread:$0]  %s978, 64, %s975, %s964
        $region44: #{tpu_custom_call.1} parent=39 // pred_fallthru
          _
      $region40: #{tpu_custom_call.1} parent=5 // pred_fallthru
        _
      %p981 = scmp.le.s32.totalorder 2, %s14
      // Predicated region
      $region45: #{tpu_custom_call.1} parent=5 // pred_check
        %p982 = pneg %p981
      $region46: #{tpu_custom_call.1} parent=5 // pred_check_branch
        %984 = sbr.rel (%p982) target = $region48
      $region47: #{tpu_custom_call.1} parent=5 // pred_region
        %s985 = ssub.s32 %s14, 2
        // Predicated region
        $region49: #{tpu_custom_call.1} parent=47 // pred_check
          %p986 = pneg %p153
        $region50: #{tpu_custom_call.1} parent=47 // pred_check_branch
          %988 = sbr.rel (%p986) target = $region52
        $region51: #{tpu_custom_call.1} parent=47 // pred_region
          %s989 = sand.u32 %s138, 1
          %s990 = scalar_lea.sflag [#allocation3], %s989
          %s991 = sand.u32 %s138, 1
          %s992 = smul.addr %s991, 4
          %s993 = scalar_lea.vmem [#allocation2], %s992
          %994 = dma.done %s990, 64
        $region52: #{tpu_custom_call.1} parent=47 // pred_fallthru
          _
      $region48: #{tpu_custom_call.1} parent=5 // pred_fallthru
        _
    $region6: #{tpu_custom_call.1} parent=1 // loop_footer
      %s18 = sadd.s32 1, %s14
    $region7: #{tpu_custom_call.1} parent=1 // loop_footer_branch
      %13 = sbr.rel target = $region3
    $region8: #{tpu_custom_call.1} parent=1 // loop_exit
      _
    %995 = vsyncpa [#allocation3], 1
    %s996 = scalar_lea.sflag [#allocation3], 1
    %997 = vsyncpa %s996, 1

</llo_original>
